<compile_context>
chip_gen: v6e
topology: v6e:2x2x1
jax: 0.10.0
libtpu: 0.0.40
codegen_flags: <defaults>
</compile_context>

<pallas_src>
import jax
import jax.numpy as jnp
from jax.experimental import pallas as pl
from jax.experimental.pallas import tpu as pltpu

BN_EPS = 1e-5


def _make_fused_kernel(n_total, extra_border, bn_eps):
    n_total = float(n_total)          # N * (H+2) * (W+2) per channel
    extra_border = float(extra_border)  # N*(Hp*Wp - H*W) - flat_pad_len
    bn_eps = float(bn_eps)

    def kernel(w_ref, b_ref, g_ref, bt_ref, x_ref, o_ref, ob_ref):
        # w/b/g/bt: (C, 1) f32 VMEM columns; x: (C, Lpad) lane-dense slab.
        w = w_ref[...]
        b = b_ref[...]

        x = x_ref[...]
        v1 = jnp.ceil(x * w + b)                       # depthwise 1x1 conv + ceil
        v4 = jnp.clip(jnp.exp(v1 * 3.0), 0.0, 6.0)     # clamp_min(.,0); clamp_max(.,6)
        v6 = v1 * v4 * (1.0 / 6.0)

        # Border pixels see only the bias (zero-padded conv input) -> per-channel const.
        v1b = jnp.ceil(b)
        v4b = jnp.clip(jnp.exp(v1b * 3.0), 0.0, 6.0)
        v6b = v1b * v4b * (1.0 / 6.0)                  # (C, 1)

        # BatchNorm batch statistics per channel over all N*Hp*Wp conv-output pixels.
        # Flat-alignment pad elements of x are zero, so they produce exactly v6b (same
        # as a border pixel); extra_border absorbs that over/under-count analytically.
        s = jnp.sum(v6, axis=-1, keepdims=True)        # (C, 1)
        mean = (s + extra_border * v6b) / n_total
        d = v6 - mean
        db = v6b - mean
        var = (jnp.sum(d * d, axis=-1, keepdims=True)
               + extra_border * (db * db)) / n_total   # biased variance (PyTorch BN)
        inv_std = jax.lax.rsqrt(var + bn_eps)

        scale = g_ref[...] * inv_std                   # fold BN affine: one mul+add/elem
        shift = bt_ref[...] - mean * scale
        o_ref[...] = (v6 * scale + shift).astype(o_ref.dtype)
        ob_ref[...] = (v6b * scale + shift).astype(ob_ref.dtype)

    return kernel


@jax.jit
def model_forward(x, conv_w, conv_b, bn_gamma, bn_beta):
    """x: (N, C, H, W) float32 in NCHW layout.  Returns (N, C, H+2, W+2)."""
    N, C, H, W = x.shape
    Hp, Wp = H + 2, W + 2

    # Lane-dense slab: (C, N*H*W), padded up to a multiple of 128 lanes if needed.
    L = N * H * W
    Lpad = ((L + 127) // 128) * 128
    pad = Lpad - L
    xf = jnp.transpose(x, (1, 0, 2, 3)).reshape(C, L)
    if pad:
        xf = jnp.pad(xf, ((0, 0), (0, pad)))           # zeros behave like border pixels

    wc = conv_w.reshape(C, 1).astype(jnp.float32)
    bc = conv_b.reshape(C, 1).astype(jnp.float32)
    gc = bn_gamma.reshape(C, 1).astype(jnp.float32)
    btc = bn_beta.reshape(C, 1).astype(jnp.float32)

    n_total = N * Hp * Wp
    extra_border = N * (Hp * Wp - H * W) - pad

    kernel = _make_fused_kernel(n_total, extra_border, BN_EPS)

    def vspec(shape):
        return pl.BlockSpec(shape, lambda i: (0, 0))

    o_flat, o_border = pl.pallas_call(
        kernel,
        out_shape=(jax.ShapeDtypeStruct((C, Lpad), x.dtype),
                   jax.ShapeDtypeStruct((C, 1), x.dtype)),
        grid=(1,),                                     # single step: no per-step overhead
        in_specs=[vspec((C, 1)), vspec((C, 1)), vspec((C, 1)), vspec((C, 1)),
                  vspec((C, Lpad))],
        out_specs=(vspec((C, Lpad)), vspec((C, 1))),
        compiler_params=pltpu.CompilerParams(
            dimension_semantics=("parallel",),
        ),
    )(wc, bc, gc, btc, xf)

    # Layout plumbing: assemble the NCHW padded-conv-shaped output.
    interior = o_flat[:, :L].reshape(C, N, H, W).transpose(1, 0, 2, 3)   # (N,C,H,W)
    out = jnp.broadcast_to(o_border.reshape(1, C, 1, 1), (N, C, Hp, Wp))
    out = out.at[:, :, 1:Hp - 1, 1:Wp - 1].set(interior)
    return out


def _reference(x, conv_w, conv_b, bn_gamma, bn_beta):
    # Pure-JAX reference for validation.
    xp = jnp.pad(x, ((0, 0), (0, 0), (1, 1), (1, 1)))
    v1 = jnp.ceil(xp * conv_w[None, :, None, None] + conv_b[None, :, None, None])
    v2 = jnp.exp(v1 * 3.0)
    v4 = jnp.clip(v2, 0.0, 6.0)
    v6 = v1 * v4 / 6.0
    mean = jnp.mean(v6, axis=(0, 2, 3), keepdims=True)
    var = jnp.mean((v6 - mean) ** 2, axis=(0, 2, 3), keepdims=True)
    y = (v6 - mean) / jnp.sqrt(var + BN_EPS)
    return y * bn_gamma[None, :, None, None] + bn_beta[None, :, None, None]


if __name__ == "__main__":
    N, C, H, W = 2, 3, 16, 16

    key = jax.random.PRNGKey(0)
    kx, kw, kb = jax.random.split(key, 3)

    x = jax.random.normal(kx, (N, C, H, W), dtype=jnp.float32)

    # Conv2d(3, 3, 1, groups=3) parameters: weight shape (3,1,1,1) -> per-channel scalar.
    conv_w = jax.random.uniform(kw, (C,), dtype=jnp.float32, minval=-1.0, maxval=1.0)
    conv_b = jax.random.uniform(kb, (C,), dtype=jnp.float32, minval=-1.0, maxval=1.0)

    # BatchNorm default affine init (applied over the actual 3 channels, see TODO above).
    bn_gamma = jnp.ones((C,), dtype=jnp.float32)
    bn_beta = jnp.zeros((C,), dtype=jnp.float32)

    out = model_forward(x, conv_w, conv_b, bn_gamma, bn_beta)
    out = jax.block_until_ready(out)

    ref = _reference(x, conv_w, conv_b, bn_gamma, bn_beta)
    assert out.shape == (N, C, H + 2, W + 2), out.shape
    assert jnp.allclose(out, ref, atol=1e-4, rtol=1e-4), float(jnp.max(jnp.abs(out - ref)))

    print("KERNEL_OK")
</pallas_src>

<mosaic_0001>
module attributes {stable_mosaic.version = 11 : i64} {
  func.func @kernel(%arg0: i32, %arg1: memref<3x1xf32, #tpu.memory_space<vmem>>, %arg2: memref<3x1xf32, #tpu.memory_space<vmem>>, %arg3: memref<3x1xf32, #tpu.memory_space<vmem>>, %arg4: memref<3x1xf32, #tpu.memory_space<vmem>>, %arg5: memref<3x512xf32, #tpu.memory_space<vmem>>, %arg6: memref<3x512xf32, #tpu.memory_space<vmem>>, %arg7: memref<3x1xf32, #tpu.memory_space<vmem>>) attributes {dimension_semantics = [#tpu.dimension_semantics<parallel>], iteration_bounds = array<i64: 1>, scalar_prefetch = 0 : i64, scratch_operands = 0 : i64, tpu.core_type = #tpu.core_type<tc>, window_params = [{pipeline_mode = #tpu.pipeline_mode<synchronous>, transform_indices = @transform_0, window_bounds = array<i64: 3, 1>}, {pipeline_mode = #tpu.pipeline_mode<synchronous>, transform_indices = @transform_1, window_bounds = array<i64: 3, 1>}, {pipeline_mode = #tpu.pipeline_mode<synchronous>, transform_indices = @transform_2, window_bounds = array<i64: 3, 1>}, {pipeline_mode = #tpu.pipeline_mode<synchronous>, transform_indices = @transform_3, window_bounds = array<i64: 3, 1>}, {pipeline_mode = #tpu.pipeline_mode<synchronous>, transform_indices = @transform_4, window_bounds = array<i64: 3, 512>}, {pipeline_mode = #tpu.pipeline_mode<synchronous>, transform_indices = @transform_5, window_bounds = array<i64: 3, 512>}, {pipeline_mode = #tpu.pipeline_mode<synchronous>, transform_indices = @transform_6, window_bounds = array<i64: 3, 1>}]} {
    %c0 = arith.constant 0 : index
    %c0_0 = arith.constant 0 : index
    %0 = vector.load %arg1[%c0, %c0_0] : memref<3x1xf32, #tpu.memory_space<vmem>>, vector<3x1xf32>
    %c0_1 = arith.constant 0 : index
    %c0_2 = arith.constant 0 : index
    %1 = vector.load %arg2[%c0_1, %c0_2] : memref<3x1xf32, #tpu.memory_space<vmem>>, vector<3x1xf32>
    %c0_3 = arith.constant 0 : index
    %c0_4 = arith.constant 0 : index
    %2 = vector.load %arg5[%c0_3, %c0_4] : memref<3x512xf32, #tpu.memory_space<vmem>>, vector<3x512xf32>
    %3 = vector.broadcast %0 : vector<3x1xf32> to vector<3x512xf32>
    %4 = arith.mulf %2, %3 : vector<3x512xf32>
    %5 = vector.broadcast %1 : vector<3x1xf32> to vector<3x512xf32>
    %6 = arith.addf %4, %5 : vector<3x512xf32>
    %7 = math.ceil %6 : vector<3x512xf32>
    %cst = arith.constant 3.000000e+00 : f32
    %8 = vector.broadcast %cst : f32 to vector<3x512xf32>
    %9 = arith.mulf %7, %8 : vector<3x512xf32>
    %10 = math.exp %9 : vector<3x512xf32>
    %cst_5 = arith.constant 0.000000e+00 : f32
    %cst_6 = arith.constant 6.000000e+00 : f32
    %11 = vector.broadcast %cst_5 : f32 to vector<3x512xf32>
    %12 = arith.maximumf %11, %10 : vector<3x512xf32>
    %13 = vector.broadcast %cst_6 : f32 to vector<3x512xf32>
    %14 = arith.minimumf %13, %12 : vector<3x512xf32>
    %15 = arith.mulf %7, %14 : vector<3x512xf32>
    %cst_7 = arith.constant 0.166666672 : f32
    %16 = vector.broadcast %cst_7 : f32 to vector<3x512xf32>
    %17 = arith.mulf %15, %16 : vector<3x512xf32>
    %18 = math.ceil %1 : vector<3x1xf32>
    %cst_8 = arith.constant 3.000000e+00 : f32
    %19 = vector.broadcast %cst_8 : f32 to vector<3x1xf32>
    %20 = arith.mulf %18, %19 : vector<3x1xf32>
    %21 = math.exp %20 : vector<3x1xf32>
    %cst_9 = arith.constant 0.000000e+00 : f32
    %cst_10 = arith.constant 6.000000e+00 : f32
    %22 = vector.broadcast %cst_9 : f32 to vector<3x1xf32>
    %23 = arith.maximumf %22, %21 : vector<3x1xf32>
    %24 = vector.broadcast %cst_10 : f32 to vector<3x1xf32>
    %25 = arith.minimumf %24, %23 : vector<3x1xf32>
    %26 = arith.mulf %18, %25 : vector<3x1xf32>
    %cst_11 = arith.constant 0.166666672 : f32
    %27 = vector.broadcast %cst_11 : f32 to vector<3x1xf32>
    %28 = arith.mulf %26, %27 : vector<3x1xf32>
    %cst_12 = arith.constant dense<0.000000e+00> : vector<3xf32>
    %29 = vector.multi_reduction <add>, %17, %cst_12 [1] : vector<3x512xf32> to vector<3xf32>
    %30 = vector.shape_cast %29 : vector<3xf32> to vector<3x1xf32>
    %cst_13 = arith.constant 1.360000e+02 : f32
    %31 = vector.broadcast %cst_13 : f32 to vector<3x1xf32>
    %32 = arith.mulf %31, %28 : vector<3x1xf32>
    %33 = arith.addf %30, %32 : vector<3x1xf32>
    %cst_14 = arith.constant 6.480000e+02 : f32
    %34 = vector.broadcast %cst_14 : f32 to vector<3x1xf32>
    %35 = arith.divf %33, %34 : vector<3x1xf32>
    %36 = vector.broadcast %35 : vector<3x1xf32> to vector<3x512xf32>
    %37 = arith.subf %17, %36 : vector<3x512xf32>
    %38 = arith.subf %28, %35 : vector<3x1xf32>
    %39 = arith.mulf %37, %37 : vector<3x512xf32>
    %cst_15 = arith.constant dense<0.000000e+00> : vector<3xf32>
    %40 = vector.multi_reduction <add>, %39, %cst_15 [1] : vector<3x512xf32> to vector<3xf32>
    %41 = vector.shape_cast %40 : vector<3xf32> to vector<3x1xf32>
    %42 = arith.mulf %38, %38 : vector<3x1xf32>
    %cst_16 = arith.constant 1.360000e+02 : f32
    %43 = vector.broadcast %cst_16 : f32 to vector<3x1xf32>
    %44 = arith.mulf %43, %42 : vector<3x1xf32>
    %45 = arith.addf %41, %44 : vector<3x1xf32>
    %cst_17 = arith.constant 6.480000e+02 : f32
    %46 = vector.broadcast %cst_17 : f32 to vector<3x1xf32>
    %47 = arith.divf %45, %46 : vector<3x1xf32>
    %cst_18 = arith.constant 9.99999974E-6 : f32
    %48 = vector.broadcast %cst_18 : f32 to vector<3x1xf32>
    %49 = arith.addf %47, %48 : vector<3x1xf32>
    %50 = math.rsqrt %49 : vector<3x1xf32>
    %c0_19 = arith.constant 0 : index
    %c0_20 = arith.constant 0 : index
    %51 = vector.load %arg3[%c0_19, %c0_20] : memref<3x1xf32, #tpu.memory_space<vmem>>, vector<3x1xf32>
    %52 = arith.mulf %51, %50 : vector<3x1xf32>
    %c0_21 = arith.constant 0 : index
    %c0_22 = arith.constant 0 : index
    %53 = vector.load %arg4[%c0_21, %c0_22] : memref<3x1xf32, #tpu.memory_space<vmem>>, vector<3x1xf32>
    %54 = arith.mulf %35, %52 : vector<3x1xf32>
    %55 = arith.subf %53, %54 : vector<3x1xf32>
    %56 = vector.broadcast %52 : vector<3x1xf32> to vector<3x512xf32>
    %57 = arith.mulf %17, %56 : vector<3x512xf32>
    %58 = vector.broadcast %55 : vector<3x1xf32> to vector<3x512xf32>
    %59 = arith.addf %57, %58 : vector<3x512xf32>
    %c0_23 = arith.constant 0 : index
    %c0_24 = arith.constant 0 : index
    %60 = vector.load %arg6[%c0_23, %c0_24] : memref<3x512xf32, #tpu.memory_space<vmem>>, vector<3x512xf32>
    tpu.vector_store %arg6[%c0_23, %c0_24], %59 {strides = array<i32>} : memref<3x512xf32, #tpu.memory_space<vmem>>, vector<3x512xf32>,
    %61 = arith.mulf %28, %52 : vector<3x1xf32>
    %62 = arith.addf %61, %55 : vector<3x1xf32>
    %c0_25 = arith.constant 0 : index
    %c0_26 = arith.constant 0 : index
    %63 = vector.load %arg7[%c0_25, %c0_26] : memref<3x1xf32, #tpu.memory_space<vmem>>, vector<3x1xf32>
    tpu.vector_store %arg7[%c0_25, %c0_26], %62 {strides = array<i32>} : memref<3x1xf32, #tpu.memory_space<vmem>>, vector<3x1xf32>,
    return
  }
  func.func @transform_0(%arg0: i32) -> (i32, i32) {
    %c0_i32 = arith.constant 0 : i32
    %c0_i32_0 = arith.constant 0 : i32
    %c0_i32_1 = arith.constant 0 : i32
    return %c0_i32, %c0_i32_0 : i32, i32
  }
  func.func @transform_1(%arg0: i32) -> (i32, i32) {
    %c0_i32 = arith.constant 0 : i32
    %c0_i32_0 = arith.constant 0 : i32
    %c0_i32_1 = arith.constant 0 : i32
    return %c0_i32, %c0_i32_0 : i32, i32
  }
  func.func @transform_2(%arg0: i32) -> (i32, i32) {
    %c0_i32 = arith.constant 0 : i32
    %c0_i32_0 = arith.constant 0 : i32
    %c0_i32_1 = arith.constant 0 : i32
    return %c0_i32, %c0_i32_0 : i32, i32
  }
  func.func @transform_3(%arg0: i32) -> (i32, i32) {
    %c0_i32 = arith.constant 0 : i32
    %c0_i32_0 = arith.constant 0 : i32
    %c0_i32_1 = arith.constant 0 : i32
    return %c0_i32, %c0_i32_0 : i32, i32
  }
  func.func @transform_4(%arg0: i32) -> (i32, i32) {
    %c0_i32 = arith.constant 0 : i32
    %c0_i32_0 = arith.constant 0 : i32
    %c0_i32_1 = arith.constant 0 : i32
    return %c0_i32, %c0_i32_0 : i32, i32
  }
  func.func @transform_5(%arg0: i32) -> (i32, i32) {
    %c0_i32 = arith.constant 0 : i32
    %c0_i32_0 = arith.constant 0 : i32
    %c0_i32_1 = arith.constant 0 : i32
    return %c0_i32, %c0_i32_0 : i32, i32
  }
  func.func @transform_6(%arg0: i32) -> (i32, i32) {
    %c0_i32 = arith.constant 0 : i32
    %c0_i32_0 = arith.constant 0 : i32
    %c0_i32_1 = arith.constant 0 : i32
    return %c0_i32, %c0_i32_0 : i32, i32
  }
}

</mosaic_0001>

<llo_original>
// kernel: model_forward.1
$region0: #{model_forward.1}
  #allocation0 [shape = 'u32[]', space=smem, size = 0x4, offset = 0x4, fixed_abs, tag = 'smem constant byte address 0x4 - core index']
  #allocation1 [shape = 'u32[144,128]{1,0:T(1,128)}', space=vmem, size = 0x12000, scoped, tag = 'internal scratch']
  %s0 = inlined_call_operand.vmem [shape: f32[3,1], index: 0, kind: input, shape index: {}]
  %s1 = inlined_call_operand.vmem [shape: f32[3,1], index: 1, kind: input, shape index: {}]
  %s2 = inlined_call_operand.vmem [shape: f32[3,1], index: 2, kind: input, shape index: {}]
  %s3 = inlined_call_operand.vmem [shape: f32[3,1], index: 3, kind: input, shape index: {}]
  %s4 = inlined_call_operand.vmem [shape: f32[3,512], index: 4, kind: input, shape index: {}]
  %s5 = inlined_call_operand.vmem [shape: f32[3,512], index: 5, kind: output, shape index: {0}]
  %s6 = inlined_call_operand.vmem [shape: f32[3,1], index: 6, kind: output, shape index: {1}]
  %7 = xla_tuple %s5, %s6
  %s8 = sld [smem:[#allocation0]]
  $region38: #{model_forward.1} parent=0
    _
  %s10 = ssub.s32 1, %s8
  %s11 = scalar_select 0, %s10, %s8
  // Predicated region
  $region2: #{model_forward.1} parent=0 // pred_check
    _
  $region3: #{model_forward.1} parent=0 // pred_check_branch
    %13 = sbr.rel (0) target = $region5
  $region4: #{model_forward.1} parent=0 // pred_region
    _
  $region5: #{model_forward.1} parent=0 // pred_fallthru
    _
  // Predicated region
  $region6: #{model_forward.1} parent=0 // pred_check
    _
  $region7: #{model_forward.1} parent=0 // pred_check_branch
    %15 = sbr.rel (0) target = $region9
  $region8: #{model_forward.1} parent=0 // pred_region
    _
  $region9: #{model_forward.1} parent=0 // pred_fallthru
    _
  // Predicated region
  $region10: #{model_forward.1} parent=0 // pred_check
    _
  $region11: #{model_forward.1} parent=0 // pred_check_branch
    %17 = sbr.rel (0) target = $region13
  $region12: #{model_forward.1} parent=0 // pred_region
    _
  $region13: #{model_forward.1} parent=0 // pred_fallthru
    _
  // Predicated region
  $region14: #{model_forward.1} parent=0 // pred_check
    _
  $region15: #{model_forward.1} parent=0 // pred_check_branch
    %19 = sbr.rel (0) target = $region17
  $region16: #{model_forward.1} parent=0 // pred_region
    _
  $region17: #{model_forward.1} parent=0 // pred_fallthru
    _
  // Predicated region
  $region18: #{model_forward.1} parent=0 // pred_check
    _
  $region19: #{model_forward.1} parent=0 // pred_check_branch
    %21 = sbr.rel (0) target = $region21
  $region20: #{model_forward.1} parent=0 // pred_region
    _
  $region21: #{model_forward.1} parent=0 // pred_fallthru
    _
  %v22 = vld [vmem:[%s0] sm:$0x7]
  %v23 = vld [vmem:[%s1] sm:$0x7]
  %v24 = vld [vmem:[%s4] sm:$0x77]
  %v25 = vld [vmem:[%s4 + $0x8] sm:$0x77]
  %27 = vset.pattern.permute.xlu0 0
  %28 = vperm.xlu0 %27, %v22
  %v29 = vpop.permute.xlu0 %28
  %v31 = vunpack.c.l.s4 839922192
  %v32 = vunpack.c.0.s8 %v31
  %v33 = vlaneseq
  %v34 = vshrl.u32 %v33, 7
  %v35 = vsub.s32 %v32, %v34
  %v36 = vrot.slane %v29, %v35
  %v38 = vmul.f32 %v24, %v36
  %v39 = vmul.f32 %v25, %v36
  %41 = vset.pattern.permute.xlu0 0
  %42 = vperm.xlu0 %41, %v23
  %v43 = vpop.permute.xlu0 %42
  %v45 = vunpack.c.l.s4 839922192
  %v46 = vunpack.c.0.s8 %v45
  %v47 = vlaneseq
  %v48 = vshrl.u32 %v47, 7
  %v49 = vsub.s32 %v46, %v48
  %v50 = vrot.slane %v43, %v49
  %v52 = vadd.f32 %v38, %v50
  %v53 = vadd.f32 %v39, %v50
  %v54 = vceil.f32 %v52
  %v55 = vceil.f32 %v53
  %v56 = vmul.f32 %v54, 3.0
  %v57 = vmul.f32 %v55, 3.0
  %v58 = vmul.f32 %v56, 1.442695
  %v59 = vpow.pop %v58
  %v60 = vmul.f32 %v57, 1.442695
  %v61 = vpow.pop %v60
  %v62 = vmax.f32 %v59, 0.0
  %v63 = vmax.f32 %v61, 0.0
  %v64 = vmin.f32 %v62, 6.0
  %v65 = vmin.f32 %v63, 6.0
  %v66 = vmul.f32 %v54, %v64
  %v67 = vmul.f32 %v55, %v65
  %v68 = vmul.f32 %v66, 0.16666667
  %v69 = vmul.f32 %v67, 0.16666667
  %v70 = vceil.f32 %v23
  %v71 = vmul.f32 %v70, 3.0
  %v72 = vmul.f32 %v71, 1.442695
  %v73 = vpow.pop %v72
  %v74 = vmax.f32 %v73, 0.0
  %v75 = vmin.f32 %v74, 6.0
  %v76 = vmul.f32 %v70, %v75
  %v77 = vmul.f32 %v76, 0.16666667
  %v80 = vcombine.high %v68, %v68
  %v81 = vcombine.high %v69, %v69
  %vm84 = vcmask 1042432
  %v85 = vsel %vm84, %v68, 0.0
  %v86 = vsel %vm84, %v80, 0.0
  %v87 = vadd.f32 %v85, %v86
  %v88 = vsel %vm84, %v69, 0.0
  %v89 = vadd.f32 %v87, %v88
  %v90 = vsel %vm84, %v81, 0.0
  %v91 = vadd.f32 %v89, %v90
  %92 = vadd.xlane.f32.xlu0 %v91
  %v93 = vpop.xlane.xlu0 %92
  %v94 = vmul.f32 %v77, 136.0
  %v95 = vadd.f32 %v93, %v94
  %v96 = vrcp.pop 648.0
  %v97 = vmul.f32 %v95, %v96
  %99 = vset.pattern.permute.xlu0 0
  %100 = vperm.xlu0 %99, %v97
  %v101 = vpop.permute.xlu0 %100
  %v103 = vunpack.c.l.s4 839922192
  %v104 = vunpack.c.0.s8 %v103
  %v105 = vlaneseq
  %v106 = vshrl.u32 %v105, 7
  %v107 = vsub.s32 %v104, %v106
  %v108 = vrot.slane %v101, %v107
  %v110 = vsub.f32 %v68, %v108
  %v111 = vsub.f32 %v69, %v108
  %v112 = vsub.f32 %v77, %v97
  %v113 = vmul.f32 %v110, %v110
  %v114 = vmul.f32 %v111, %v111
  %v117 = vcombine.high %v113, %v113
  %v118 = vcombine.high %v114, %v114
  %v121 = vsel %vm84, %v113, 0.0
  %v122 = vsel %vm84, %v117, 0.0
  %v123 = vadd.f32 %v121, %v122
  %v124 = vsel %vm84, %v114, 0.0
  %v125 = vadd.f32 %v123, %v124
  %v126 = vsel %vm84, %v118, 0.0
  %v127 = vadd.f32 %v125, %v126
  %128 = vadd.xlane.f32.xlu0 %v127
  %v129 = vpop.xlane.xlu0 %128
  %v130 = vmul.f32 %v112, %v112
  %v131 = vmul.f32 %v130, 136.0
  %v132 = vadd.f32 %v129, %v131
  %v133 = vmul.f32 %v132, %v96
  %v134 = vadd.f32 %v133, 1e-05
  %v135 = vrsqrt.pop %v134
  %v136 = vld [vmem:[%s2] sm:$0x7]
  %v137 = vmul.f32 %v136, %v135
  %v138 = vld [vmem:[%s3] sm:$0x7]
  %v139 = vmul.f32 %v97, %v137
  %v140 = vsub.f32 %v138, %v139
  %142 = vset.pattern.permute.xlu0 0
  %143 = vperm.xlu0 %142, %v137
  %v144 = vpop.permute.xlu0 %143
  %v146 = vunpack.c.l.s4 839922192
  %v147 = vunpack.c.0.s8 %v146
  %v148 = vlaneseq
  %v149 = vshrl.u32 %v148, 7
  %v150 = vsub.s32 %v147, %v149
  %v151 = vrot.slane %v144, %v150
  %v153 = vmul.f32 %v68, %v151
  %v154 = vmul.f32 %v69, %v151
  %156 = vset.pattern.permute.xlu0 0
  %157 = vperm.xlu0 %156, %v140
  %v158 = vpop.permute.xlu0 %157
  %v160 = vunpack.c.l.s4 839922192
  %v161 = vunpack.c.0.s8 %v160
  %v162 = vlaneseq
  %v163 = vshrl.u32 %v162, 7
  %v164 = vsub.s32 %v161, %v163
  %v165 = vrot.slane %v158, %v164
  %v167 = vadd.f32 %v153, %v165
  %v168 = vadd.f32 %v154, %v165
  %169 = vst [vmem:[%s5] sm:$0x77] %v167
  %170 = vst [vmem:[%s5 + $0x8] sm:$0x77] %v168
  %v171 = vmul.f32 %v77, %v137
  %v172 = vadd.f32 %v171, %v140
  %vm173 = vcmask 2048
  %174 = vst.msk [vmem:[%s6] sm:$0x7] %vm173, %v172
  // Predicated region
  $region22: #{model_forward.1} parent=0 // pred_check
    _
  $region23: #{model_forward.1} parent=0 // pred_check_branch
    %176 = sbr.rel (0) target = $region25
  $region24: #{model_forward.1} parent=0 // pred_region
    _
  $region25: #{model_forward.1} parent=0 // pred_fallthru
    _
  // Predicated region
  $region26: #{model_forward.1} parent=0 // pred_check
    _
  $region27: #{model_forward.1} parent=0 // pred_check_branch
    %178 = sbr.rel (0) target = $region29
  $region28: #{model_forward.1} parent=0 // pred_region
    _
  $region29: #{model_forward.1} parent=0 // pred_fallthru
    _
  // Predicated region
  $region30: #{model_forward.1} parent=0 // pred_check
    _
  $region31: #{model_forward.1} parent=0 // pred_check_branch
    %180 = sbr.rel (0) target = $region33
  $region32: #{model_forward.1} parent=0 // pred_region
    _
  $region33: #{model_forward.1} parent=0 // pred_fallthru
    _
  // Predicated region
  $region34: #{model_forward.1} parent=0 // pred_check
    _
  $region35: #{model_forward.1} parent=0 // pred_check_branch
    %182 = sbr.rel (0) target = $region37
  $region36: #{model_forward.1} parent=0 // pred_region
    _
  $region37: #{model_forward.1} parent=0 // pred_fallthru
    _

</llo_original>
